<compile_context>
chip_gen: v7x
topology: tpu7x:2x2x1
jax: 0.10.0
libtpu: 0.0.40
codegen_flags: <defaults>
</compile_context>

<pallas_src>
import functools
import math

import numpy as np
import jax
import jax.numpy as jnp
from jax.experimental import pallas as pl
from jax.experimental.pallas import tpu as pltpu

F32_MIN = float(np.finfo(np.float32).min)


# ----------------------------------------------------------------------------
# In-VMEM legacy rel_shift (square tiles), exact replica of the PyTorch view trick.
# ----------------------------------------------------------------------------
def _legacy_rel_shift_square(bd):
    """Legacy ESPnet rel_shift of a square (T, T) tile, computed in VMEM.

    Reproduces
        pad = concat([zeros(T, 1), bd], -1)          # (T, T+1)
        out = pad.reshape(T+1, T)[1:, :].reshape(T, T)
    via (square case): with R[r, :] = roll_right(bd[r, :], r + 1) and
    R_up[i, :] = R[i + 1, :]:
        out[i, j] = R[i, j]     if j <= i
                  = 0           if j == i + 1
                  = R_up[i, j]  if j >= i + 2
    The row-dependent roll uses a barrel shifter of uniform static rotations
    (XLU pltpu.roll when lane-aligned, slice+concat fallback otherwise)
    selected per row with a single (T,1) iota.
    """
    T = bd.shape[0]
    use_xlu = (T % 128 == 0)          # pltpu.roll needs native lane tiling

    def roll_right_lanes(x, sh):      # == np.roll(x, sh, axis=1), static sh
        if use_xlu:
            return pltpu.roll(x, sh, 1)
        return jnp.concatenate([x[:, T - sh:], x[:, :T - sh]], axis=1)

    row = jax.lax.broadcasted_iota(jnp.int32, (T, 1), 0)       # (T, 1)
    amt = row + 1                                              # per-row roll amount

    y = bd
    s = 1
    while s < T:                      # static loop over the bits of (row + 1)
        rolled = roll_right_lanes(y, s)
        y = jnp.where((amt & s) != 0, rolled, y)
        s *= 2
    # (a roll by exactly T is the identity, so the bit `s == T` never matters)

    if use_xlu:
        r_up = pltpu.roll(y, T - 1, 0)                         # rows shifted up by 1
    else:
        r_up = jnp.concatenate([y[1:, :], y[:1, :]], axis=0)

    col = jax.lax.broadcasted_iota(jnp.int32, (1, T), 1)       # (1, T)
    # j <= i -> y ; j == i+1 -> 0 ; j >= i+2 -> r_up   (single fused select)
    return jnp.where(col <= row, y, jnp.where(col > amt, r_up, 0.0))


# ----------------------------------------------------------------------------
# Kernel P: pos projection (computed once, hoisted out of the batch grid).
# ----------------------------------------------------------------------------
def _pos_proj_kernel(p_ref, wpt_ref, o_ref):
    bf16 = jnp.bfloat16
    o_ref[...] = jnp.dot(p_ref[0].astype(bf16), wpt_ref[...],
                         preferred_element_type=jnp.float32).astype(bf16)


# ----------------------------------------------------------------------------
# Kernel 1: full-width Q/K/V projections (grid over batch), lane-dense bf16 outputs.
# Scale 1/sqrt(d_k) is already folded into Wq / bq passed in.
# ----------------------------------------------------------------------------
def _proj_kernel(q_ref, k_ref, v_ref,
                 wqt_ref, bq_ref, wkt_ref, bk_ref, wvt_ref, bv_ref,
                 qo_ref, ko_ref, vo_ref):
    bf16 = jnp.bfloat16
    xq = q_ref[0].astype(bf16)          # (T1, F)
    xk = k_ref[0].astype(bf16)          # (T2, F)
    xv = v_ref[0].astype(bf16)          # (T2, F)

    q_full = jnp.dot(xq, wqt_ref[...], preferred_element_type=jnp.float32) + bq_ref[...]
    k_full = jnp.dot(xk, wkt_ref[...], preferred_element_type=jnp.float32) + bk_ref[...]
    v_full = jnp.dot(xv, wvt_ref[...], preferred_element_type=jnp.float32) + bv_ref[...]

    qo_ref[0, :, :] = q_full.astype(bf16)   # q / sqrt(d_k), pos biases added later
    ko_ref[0, :, :] = k_full.astype(bf16)
    vo_ref[0, :, :] = v_full.astype(bf16)


# ----------------------------------------------------------------------------
# Kernel 2: fused per-(batch, head-block) attention.  Scores, rel_shift, softmax
# and attn @ v stay in VMEM; the output projection is one (T1, hb*d_k)@(hb*d_k, F)
# matmul per step accumulated over the head-block grid axis in a (T1, F) scratch.
# ----------------------------------------------------------------------------
def _attn_kernel(q_ref, k_ref, v_ref, p_ref, mask_ref, pbu_ref, pbv_ref,
                 wot_ref, bo_ref, out_ref, acc_ref, *, hb, d_k):
    g = pl.program_id(1)

    @pl.when(g == 0)
    def _():
        acc_ref[...] = jnp.zeros_like(acc_ref)

    bf16 = jnp.bfloat16
    masked0 = mask_ref[0] == 0          # (1, T2), hoisted: once per grid step

    ctx_parts = []
    for hh in range(hb):                # static unrolled loop over packed heads
        c0 = hh * d_k
        q_h = q_ref[0, :, c0:c0 + d_k]                  # (T1, d_k) bf16
        k_h = k_ref[0, :, c0:c0 + d_k]                  # (T2, d_k) bf16
        v_h = v_ref[0, :, c0:c0 + d_k]                  # (T2, d_k) bf16
        p_h = p_ref[:, c0:c0 + d_k]                     # (T2, d_k) bf16
        u_h = pbu_ref[:, c0:c0 + d_k]                   # (1, d_k)  bf16 (scaled)
        w_h = pbv_ref[:, c0:c0 + d_k]                   # (1, d_k)  bf16 (scaled)

        q_u = q_h + u_h
        q_v = q_h + w_h

        # matrix_ac = (q + u) @ k^T ; matrix_bd = rel_shift((q + v) @ p^T)
        ac = jax.lax.dot_general(q_u, k_h, (((1,), (1,)), ((), ())),
                                 preferred_element_type=jnp.float32)   # (T1, T2)
        bd = jax.lax.dot_general(q_v, p_h, (((1,), (1,)), ((), ())),
                                 preferred_element_type=jnp.float32)   # (T1, T2)
        bd = _legacy_rel_shift_square(bd)

        scores = ac + bd                # 1/sqrt(d_k) already folded into q-side
        scores = jnp.where(masked0, F32_MIN, scores)
        m = jnp.max(scores, axis=-1, keepdims=True)
        e = jnp.exp(scores - m)
        denom = jnp.sum(e, axis=-1, keepdims=True)
        attn = e * pl.reciprocal(denom, approx=True)    # EUP, off the VPU slot
        attn = jnp.where(masked0, 0.0, attn)

        ctx_parts.append(jnp.dot(attn.astype(bf16), v_h,
                                 preferred_element_type=jnp.float32))  # (T1, d_k)

    ctx_blk = jnp.concatenate(ctx_parts, axis=1)        # (T1, hb*d_k) f32
    # concat-over-heads + linear_out: one K = hb*d_k matmul per step, accumulated
    # over the head-block grid axis in VMEM (not vregs).
    acc_ref[...] += jnp.dot(ctx_blk.astype(bf16), wot_ref[...],
                            preferred_element_type=jnp.float32)        # (T1, F)

    @pl.when(g == pl.num_programs(1) - 1)
    def _():
        out_ref[0, :, :] = acc_ref[...] + bo_ref[...]


# ----------------------------------------------------------------------------
# Wrapper
# ----------------------------------------------------------------------------
def legacy_rel_pos_mha(query, key, value, pos_emb, mask,
                       wq, bq, wk, bk, wv, bv, wp, wo, bo, pbu, pbv, n_head,
                       vmem_limit_bytes=None):
    # vmem_limit_bytes: leave None (default scoped limit) for small/medium T;
    # raise toward ~64-100 MiB on v5e/v6e for long sequences (see module TODOs).
    f32, bf16 = jnp.float32, jnp.bfloat16
    B, T1, F = query.shape
    T2 = key.shape[1]
    Tp = pos_emb.shape[1]
    d_k = F // n_head

    assert pos_emb.shape[0] == 1, "pos_emb must have batch size 1 (legacy usage)"
    assert T1 == T2 == Tp, (
        "legacy rel-pos self-attention requires time1 == time2 == pos_emb length")
    if mask is None:
        mask = jnp.ones((B, 1, T2), jnp.int32)   # identical to the no-mask path

    # Head packing: process hb heads per attention grid step so the head-sliced
    # last-dim block is 128 lanes (or full F), and the grid has fewer steps.
    hb = min(n_head, max(1, 128 // d_k))
    while n_head % hb:
        hb -= 1
    hbd = hb * d_k
    n_hb = n_head // hb

    # Parameter plumbing (glue): pre-transpose weights so kernels compute
    # y = x @ W^T + b as plain matmuls, pre-cast weights to bf16, lift biases to
    # (1, F) lane slabs, and fold 1/sqrt(d_k) into the q-side parameters.
    scale = 1.0 / math.sqrt(d_k)
    wqt = (wq.T * scale).astype(bf16)
    wkt, wvt = wk.T.astype(bf16), wv.T.astype(bf16)
    wpt, wot = wp.T.astype(bf16), wo.T.astype(bf16)
    bq2 = (bq * scale).reshape(1, F).astype(f32)
    bk2, bv2, bo2 = bk.reshape(1, F), bv.reshape(1, F), bo.reshape(1, F)
    pbu2 = (pbu.reshape(1, F) * scale).astype(bf16)
    pbv2 = (pbv.reshape(1, F) * scale).astype(bf16)

    full2 = lambda *_: (0, 0)

    # ---- pos projection, computed once (batch independent) -------------------
    p_proj = pl.pallas_call(
        _pos_proj_kernel,
        grid=(1,),
        in_specs=[
            pl.BlockSpec((1, Tp, F), lambda i: (0, 0, 0)),
            pl.BlockSpec((F, F), lambda i: (0, 0)),
        ],
        out_specs=pl.BlockSpec((Tp, F), lambda i: (0, 0)),
        out_shape=jax.ShapeDtypeStruct((Tp, F), bf16),
        compiler_params=pltpu.CompilerParams(vmem_limit_bytes=vmem_limit_bytes),
    )(pos_emb, wpt)

    # ---- Q/K/V projections (grid over batch), bf16 outputs -------------------
    q_full, k_proj, v_proj = pl.pallas_call(
        _proj_kernel,
        grid=(B,),
        in_specs=[
            pl.BlockSpec((1, T1, F), lambda b: (b, 0, 0)),   # query
            pl.BlockSpec((1, T2, F), lambda b: (b, 0, 0)),   # key
            pl.BlockSpec((1, T2, F), lambda b: (b, 0, 0)),   # value
            pl.BlockSpec((F, F), full2), pl.BlockSpec((1, F), full2),   # Wq^T/s, bq/s
            pl.BlockSpec((F, F), full2), pl.BlockSpec((1, F), full2),   # Wk^T,  bk
            pl.BlockSpec((F, F), full2), pl.BlockSpec((1, F), full2),   # Wv^T,  bv
        ],
        out_specs=[
            pl.BlockSpec((1, T1, F), lambda b: (b, 0, 0)),
            pl.BlockSpec((1, T2, F), lambda b: (b, 0, 0)),
            pl.BlockSpec((1, T2, F), lambda b: (b, 0, 0)),
        ],
        out_shape=[
            jax.ShapeDtypeStruct((B, T1, F), bf16),
            jax.ShapeDtypeStruct((B, T2, F), bf16),
            jax.ShapeDtypeStruct((B, T2, F), bf16),
        ],
        compiler_params=pltpu.CompilerParams(
            dimension_semantics=("parallel",),
            vmem_limit_bytes=vmem_limit_bytes),
    )(query, key, value, wqt, bq2, wkt, bk2, wvt, bv2)

    # ---- fused attention, grid over (batch, head-block) ----------------------
    out = pl.pallas_call(
        functools.partial(_attn_kernel, hb=hb, d_k=d_k),
        grid=(B, n_hb),
        in_specs=[
            pl.BlockSpec((1, T1, hbd), lambda b, g: (b, 0, g)),   # q (scaled)
            pl.BlockSpec((1, T2, hbd), lambda b, g: (b, 0, g)),   # k
            pl.BlockSpec((1, T2, hbd), lambda b, g: (b, 0, g)),   # v
            pl.BlockSpec((Tp, hbd),    lambda b, g: (0, g)),      # p
            pl.BlockSpec((1, 1, T2),   lambda b, g: (b, 0, 0)),   # mask (B,1,T2)
            pl.BlockSpec((1, hbd),     lambda b, g: (0, g)),      # pos_bias_u / s
            pl.BlockSpec((1, hbd),     lambda b, g: (0, g)),      # pos_bias_v / s
            pl.BlockSpec((hbd, F),     lambda b, g: (g, 0)),      # Wout^T row block
            pl.BlockSpec((1, F),       lambda b, g: (0, 0)),      # bout
        ],
        out_specs=pl.BlockSpec((1, T1, F), lambda b, g: (b, 0, 0)),
        out_shape=jax.ShapeDtypeStruct((B, T1, F), f32),
        scratch_shapes=[pltpu.VMEM((T1, F), f32)],
        compiler_params=pltpu.CompilerParams(
            dimension_semantics=("parallel", "arbitrary"),
            vmem_limit_bytes=vmem_limit_bytes),
    )(q_full, k_proj, v_proj, p_proj, mask, pbu2, pbv2, wot, bo2)
    return out


# ----------------------------------------------------------------------------
# Pure-JAX reference (mirrors the PyTorch forward) for a correctness check.
# ----------------------------------------------------------------------------
def rel_shift_ref(x):
    B, H, T1, T2 = x.shape
    zero_pad = jnp.zeros((B, H, T1, 1), x.dtype)
    x_padded = jnp.concatenate([zero_pad, x], axis=-1)       # (B, H, T1, T2+1)
    x_padded = x_padded.reshape(B, H, T2 + 1, T1)
    return x_padded[:, :, 1:].reshape(B, H, T1, T2)


def reference(query, key, value, pos_emb, mask,
              wq, bq, wk, bk, wv, bv, wp, wo, bo, pbu, pbv, n_head):
    B, T1, F = query.shape
    d_k = F // n_head

    def proj(x, w, b=None):
        y = x @ w.T + (b if b is not None else 0.0)
        return y.reshape(x.shape[0], -1, n_head, d_k).transpose(0, 2, 1, 3)

    q = proj(query, wq, bq)
    k = proj(key, wk, bk)
    v = proj(value, wv, bv)
    p = proj(pos_emb, wp)                       # (1, H, Tp, d_k)
    p = jnp.broadcast_to(p, (B,) + p.shape[1:])

    q = q.transpose(0, 2, 1, 3)                 # (B, T1, H, d_k)
    q_u = (q + pbu).transpose(0, 2, 1, 3)
    q_v = (q + pbv).transpose(0, 2, 1, 3)

    ac = jnp.einsum('bhtd,bhsd->bhts', q_u, k)
    bd = rel_shift_ref(jnp.einsum('bhtd,bhsd->bhts', q_v, p))
    scores = (ac + bd) / math.sqrt(d_k)

    m = (mask[:, None, :, :] == 0)              # (B,1,1,T2)
    scores = jnp.where(m, F32_MIN, scores)
    attn = jax.nn.softmax(scores, axis=-1)
    attn = jnp.where(m, 0.0, attn)
    x = jnp.einsum('bhts,bhsd->bhtd', attn, v)
    x = x.transpose(0, 2, 1, 3).reshape(B, T1, F)
    return x @ wo.T + bo


if __name__ == "__main__":
    B, T, n_head, n_feat = 2, 8, 4, 32
    d_k = n_feat // n_head
    f32 = jnp.float32

    ks = jax.random.split(jax.random.PRNGKey(0), 16)
    query = jax.random.normal(ks[0], (B, T, n_feat), f32)
    key_in = jax.random.normal(ks[1], (B, T, n_feat), f32)
    value = jax.random.normal(ks[2], (B, T, n_feat), f32)
    pos_emb = jax.random.normal(ks[3], (1, T, n_feat), f32)
    mask = jnp.ones((B, 1, T), jnp.int32).at[1, 0, T - 2:].set(0)

    s = 0.1  # deterministic synthetic parameters (no checkpoint loading)
    wq = s * jax.random.normal(ks[4], (n_feat, n_feat), f32)
    bq = s * jax.random.normal(ks[5], (n_feat,), f32)
    wk = s * jax.random.normal(ks[6], (n_feat, n_feat), f32)
    bk = s * jax.random.normal(ks[7], (n_feat,), f32)
    wv = s * jax.random.normal(ks[8], (n_feat, n_feat), f32)
    bv = s * jax.random.normal(ks[9], (n_feat,), f32)
    wp = s * jax.random.normal(ks[10], (n_feat, n_feat), f32)   # linear_pos, no bias
    wo = s * jax.random.normal(ks[11], (n_feat, n_feat), f32)
    bo = s * jax.random.normal(ks[12], (n_feat,), f32)
    pbu = s * jax.random.normal(ks[13], (n_head, d_k), f32)     # pos_bias_u
    pbv = s * jax.random.normal(ks[14], (n_head, d_k), f32)     # pos_bias_v

    args = (query, key_in, value, pos_emb, mask,
            wq, bq, wk, bk, wv, bv, wp, wo, bo, pbu, pbv, n_head)

    out = legacy_rel_pos_mha(*args)
    jax.block_until_ready(out)

    ref = reference(*args)
    np.testing.assert_allclose(np.asarray(out), np.asarray(ref), rtol=2e-2, atol=2e-2)
    print("KERNEL_OK")
</pallas_src>

<mosaic_0001>
module attributes {stable_mosaic.version = 11 : i64} {
  func.func @_pos_proj_kernel(%arg0: i32, %arg1: memref<1x8x32xf32, #tpu.memory_space<vmem>>, %arg2: memref<32x32xbf16, #tpu.memory_space<vmem>>, %arg3: memref<8x32xbf16, #tpu.memory_space<vmem>>) attributes {dimension_semantics = [#tpu.dimension_semantics<arbitrary>], iteration_bounds = array<i64: 1>, scalar_prefetch = 0 : i64, scratch_operands = 0 : i64, tpu.core_type = #tpu.core_type<tc>, window_params = [{pipeline_mode = #tpu.pipeline_mode<synchronous>, transform_indices = @transform_0, window_bounds = array<i64: 1, 8, 32>}, {pipeline_mode = #tpu.pipeline_mode<synchronous>, transform_indices = @transform_1, window_bounds = array<i64: 32, 32>}, {pipeline_mode = #tpu.pipeline_mode<synchronous>, transform_indices = @transform_2, window_bounds = array<i64: 8, 32>}]} {
    %c0 = arith.constant 0 : index
    %c0_0 = arith.constant 0 : index
    %c0_1 = arith.constant 0 : index
    %0 = vector.load %arg1[%c0, %c0_0, %c0_1] : memref<1x8x32xf32, #tpu.memory_space<vmem>>, vector<1x8x32xf32>
    %1 = vector.shape_cast %0 : vector<1x8x32xf32> to vector<8x32xf32>
    %2 = arith.truncf %1 : vector<8x32xf32> to vector<8x32xbf16>
    %c0_2 = arith.constant 0 : index
    %c0_3 = arith.constant 0 : index
    %3 = vector.load %arg2[%c0_2, %c0_3] : memref<32x32xbf16, #tpu.memory_space<vmem>>, vector<32x32xbf16>
    %cst = arith.constant dense<0.000000e+00> : vector<8x32xf32>
    %4 = tpu.matmul %2, %3, %cst {dimension_numbers = #tpu.dot_dimension_numbers<[1], [0], [0], [1], [0, 0, 1, 1], [], []>} : vector<8x32xbf16>, vector<32x32xbf16>, vector<8x32xf32> -> vector<8x32xf32>
    %5 = arith.truncf %4 : vector<8x32xf32> to vector<8x32xbf16>
    %c0_4 = arith.constant 0 : index
    %c0_5 = arith.constant 0 : index
    %6 = vector.load %arg3[%c0_4, %c0_5] : memref<8x32xbf16, #tpu.memory_space<vmem>>, vector<8x32xbf16>
    tpu.vector_store %arg3[%c0_4, %c0_5], %5 {strides = array<i32>} : memref<8x32xbf16, #tpu.memory_space<vmem>>, vector<8x32xbf16>,
    return
  }
  func.func @transform_0(%arg0: i32) -> (i32, i32, i32) {
    %c0_i32 = arith.constant 0 : i32
    %c0_i32_0 = arith.constant 0 : i32
    %c0_i32_1 = arith.constant 0 : i32
    %c0_i32_2 = arith.constant 0 : i32
    return %c0_i32, %c0_i32_0, %c0_i32_1 : i32, i32, i32
  }
  func.func @transform_1(%arg0: i32) -> (i32, i32) {
    %c0_i32 = arith.constant 0 : i32
    %c0_i32_0 = arith.constant 0 : i32
    %c0_i32_1 = arith.constant 0 : i32
    return %c0_i32, %c0_i32_0 : i32, i32
  }
  func.func @transform_2(%arg0: i32) -> (i32, i32) {
    %c0_i32 = arith.constant 0 : i32
    %c0_i32_0 = arith.constant 0 : i32
    %c0_i32_1 = arith.constant 0 : i32
    return %c0_i32, %c0_i32_0 : i32, i32
  }
}

</mosaic_0001>

<llo_original>
// kernel: tpu_custom_call.1
$region0: #{tpu_custom_call.1}
  #allocation0 [shape = 'u32[]', space=smem, size = 0x4, offset = 0x4, fixed_abs, tag = 'smem constant byte address 0x4 - core index']
  #allocation1 [shape = 'u32[144,128]{1,0:T(1,128)}', space=vmem, size = 0x12000, scoped, tag = 'internal scratch']
  %s0 = inlined_call_operand.hbm [shape: f32[1,8,32], index: 0, kind: input, shape index: {}]
  %s1 = inlined_call_operand.hbm [shape: bf16[32,32], index: 1, kind: input, shape index: {}]
  %s2 = inlined_call_operand.hbm [shape: bf16[8,32], index: 2, kind: output, shape index: {}]
  %s3 = sld [smem:[#allocation0]]
  $region26: #{tpu_custom_call.1} parent=0
    _
  %s5 = ssub.s32 1, %s3
  %s6 = scalar_select 0, %s5, %s3
  $region1: #{tpu_custom_call.1} parent=0
    #allocation2 [shape = 'u8[4096]{0}', space=vmem, size = 0x1000, scoped, tag = 'input window, operand 0, single buffered']
    #allocation3 [shape = 's32[1]{0}', space=sflag, size = 0x4, scoped, tag = 'scoped memory for tpu_custom_call.1']
    #allocation4 [shape = 's32[1]{0}', space=sflag, size = 0x4, scoped, tag = 'scoped memory for tpu_custom_call.1']
    #allocation5 [shape = 'u8[8192]{0}', space=vmem, size = 0x2000, scoped, tag = 'input window, operand 1, single buffered']
    #allocation6 [shape = 's32[1]{0}', space=sflag, size = 0x4, scoped, tag = 'scoped memory for tpu_custom_call.1']
    #allocation7 [shape = 'u8[2048]{0}', space=vmem, size = 0x800, scoped, tag = 'output window, operand 0, single buffered']
    %7 = vsyncpa [#allocation3], 0
    %8 = vsyncpa [#allocation6], 0
    %9 = vsyncpa [#allocation4], 0
    // Predicated region
    $region2: #{tpu_custom_call.1} parent=1 // pred_check
      _
    $region3: #{tpu_custom_call.1} parent=1 // pred_check_branch
      %11 = sbr.rel (0) target = $region5
    $region4: #{tpu_custom_call.1} parent=1 // pred_region
      %s13 = ssub.s32 128, 128
      %14 = vsyncadd [#allocation3], %s13
      %s16 = sshll.u32 [#allocation2], 4
      %s17 = int_to_ptr.vmem [resolvable:$true] %s16
      %19 = dma.hbm_to_vmem [thread:$0]  %s0, 128, %s17, [#allocation3]
    $region5: #{tpu_custom_call.1} parent=1 // pred_fallthru
      _
    // Predicated region
    $region6: #{tpu_custom_call.1} parent=1 // pred_check
      _
    $region7: #{tpu_custom_call.1} parent=1 // pred_check_branch
      %21 = sbr.rel (0) target = $region9
    $region8: #{tpu_custom_call.1} parent=1 // pred_region
      %s23 = ssub.s32 256, 256
      %24 = vsyncadd [#allocation6], %s23
      %s25 = sshll.u32 [#allocation5], 4
      %s26 = int_to_ptr.vmem [resolvable:$true] %s25
      %31 = dma.hbm_to_vmem [thread:$0]  %s1, 256, %s26, [#allocation6], 64, 64, 4
    $region9: #{tpu_custom_call.1} parent=1 // pred_fallthru
      _
    // Predicated region
    $region10: #{tpu_custom_call.1} parent=1 // pred_check
      _
    $region11: #{tpu_custom_call.1} parent=1 // pred_check_branch
      %33 = sbr.rel (0) target = $region13
    $region12: #{tpu_custom_call.1} parent=1 // pred_region
      %34 = dma.done [#allocation3], 128
    $region13: #{tpu_custom_call.1} parent=1 // pred_fallthru
      _
    // Predicated region
    $region14: #{tpu_custom_call.1} parent=1 // pred_check
      _
    $region15: #{tpu_custom_call.1} parent=1 // pred_check_branch
      %36 = sbr.rel (0) target = $region17
    $region16: #{tpu_custom_call.1} parent=1 // pred_region
      %37 = dma.done [#allocation6], 256
    $region17: #{tpu_custom_call.1} parent=1 // pred_fallthru
      _
    %v39 = vld [vmem:[#allocation2] sm:$0xff]
    %v40 = vpack.c.bf16 %v39, %v39
    %v41 = vld [vmem:[#allocation5] sm:$0xf]
    %v42 = vld [vmem:[#allocation5 + $0x4] sm:$0xf]
    %v43 = vld [vmem:[#allocation5 + $0x8] sm:$0xf]
    %v44 = vld [vmem:[#allocation5 + $0xc] sm:$0xf]
    %v49 = vunpack.c.l.b16 %v41
    %v50 = vunpack.c.l.b16 %v42
    %v51 = vunpack.c.l.b16 %v43
    %v52 = vunpack.c.l.b16 %v44
    %v53 = vpack.c.b16 %v50, %v49
    %v54 = vpack.c.b16 %v52, %v51
    %vm57 = vcmask 261120
    %v59 = vsel %vm57, %v40, 0
    %61 = vmatprep.subr.bf16.mxu0 0
    %62 = vmatpush1.bf16.msra.mxu0 %v53
    %63 = vmatprep.subr.bf16.mxu0 0
    %64 = vmatpush1.bf16.msra.mxu0 %v54
    %65 = vmatprep.subr.bf16.mxu0 0
    %66 = vmatpush1.bf16.msra.mxu0 0
    %67 = vmatprep.subr.bf16.mxu0 0
    %68 = vmatpush1.bf16.msra.mxu0 0
    %69 = vmatprep.subr.bf16.mxu0 0
    %70 = vmatpush1.bf16.msra.mxu0 0
    %71 = vmatprep.subr.bf16.mxu0 0
    %72 = vmatpush1.bf16.msra.mxu0 0
    %73 = vmatprep.subr.bf16.mxu0 0
    %74 = vmatpush1.bf16.msra.mxu0 0
    %75 = vmatprep.subr.bf16.mxu0 0
    %76 = vmatpush1.bf16.msra.mxu0 0
    %77 = vmatprep.subr.bf16.mxu0 0
    %78 = vmatpush1.bf16.msra.mxu0 0
    %79 = vmatprep.subr.bf16.mxu0 0
    %80 = vmatpush1.bf16.msra.mxu0 0
    %81 = vmatprep.subr.bf16.mxu0 0
    %82 = vmatpush1.bf16.msra.mxu0 0
    %83 = vmatprep.subr.bf16.mxu0 0
    %84 = vmatpush1.bf16.msra.mxu0 0
    %85 = vmatprep.subr.bf16.mxu0 0
    %86 = vmatpush1.bf16.msra.mxu0 0
    %87 = vmatprep.subr.bf16.mxu0 0
    %88 = vmatpush1.bf16.msra.mxu0 0
    %89 = vmatprep.subr.bf16.mxu0 0
    %90 = vmatpush1.bf16.msra.mxu0 0
    %91 = vmatprep.subr.bf16.mxu0 0
    %92 = vmatpush1.bf16.msra.mxu0 0
    %93 = vmatprep.mubr.bf16.mxu0 0
    %94 = vmatmul.mubr.bf16.gmra.mrb[0].mxu0 %v59
    %v95 = vpop.f32.mrb[0].mxu0
    %v96 = vadd.f32 0.0, %v95
    %v97 = vpop.f32.mrb[0].mxu0
    %v98 = vpop.f32.mrb[0].mxu0
    %v99 = vpop.f32.mrb[0].mxu0
    %100 = vdwg.mxu0
    %v101 = vpack.c.bf16 %v96, %v96
    %vm102 = vcmask 257024
    %103 = vst.msk [vmem:[#allocation7] sm:$0xf] %vm102, %v101
    // Predicated region
    $region18: #{tpu_custom_call.1} parent=1 // pred_check
      _
    $region19: #{tpu_custom_call.1} parent=1 // pred_check_branch
      %105 = sbr.rel (0) target = $region21
    $region20: #{tpu_custom_call.1} parent=1 // pred_region
      %s107 = ssub.s32 64, 64
      %108 = vsyncadd [#allocation4], %s107
      %s110 = sshll.u32 [#allocation7], 4
      %s111 = int_to_ptr.vmem [resolvable:$true] %s110
      %113 = dma.vmem_to_hbm [thread:$0]  %s111, 64, %s2, [#allocation4]
    $region21: #{tpu_custom_call.1} parent=1 // pred_fallthru
      _
    // Predicated region
    $region22: #{tpu_custom_call.1} parent=1 // pred_check
      _
    $region23: #{tpu_custom_call.1} parent=1 // pred_check_branch
      %115 = sbr.rel (0) target = $region25
    $region24: #{tpu_custom_call.1} parent=1 // pred_region
      %116 = dma.done [#allocation4], 64
    $region25: #{tpu_custom_call.1} parent=1 // pred_fallthru
      _
    %117 = vsyncpa [#allocation3], 1
    %118 = vsyncpa [#allocation6], 1
    %119 = vsyncpa [#allocation4], 1

</llo_original>
